<compile_context>
chip_gen: v7x
topology: tpu7x:2x2x1
jax: 0.10.0
libtpu: 0.0.40
codegen_flags: <defaults>
</compile_context>

<pallas_src>
import functools

import jax
import jax.numpy as jnp
from jax.experimental import pallas as pl
from jax.experimental.pallas import tpu as pltpu


# --------------------------------------------------------------------------- #
# Kernel
# --------------------------------------------------------------------------- #
def _residual_body(cin, cmid_p, cout, img_w,
                   x_ref, mask_ref, pcol_ref, w1_ref, w2_ref, w3_ref,
                   skipw_ref, out_ref):
    x = x_ref[...]                                   # (Cin, N) f32, lane-dense
    n = x.shape[1]

    # Packed per-channel columns: [bn1_s, bn1_b, bn2_shift, bn3_shift, out_bias]
    bn1_s = pcol_ref[:cin, 0:1]
    bn1_b = pcol_ref[:cin, 1:2]
    bn2_b = pcol_ref[:cmid_p, 2:3]
    bn3_b = pcol_ref[:cmid_p, 3:4]
    b_out = pcol_ref[:cout, 4:5]

    # ---- skip branch: 1x1 conv (bias folded into b_out) or identity ---------
    if skipw_ref is not None:
        residual = jnp.dot(skipw_ref[...], x, preferred_element_type=jnp.float32)
    else:
        residual = x

    # ---- bn1 + relu ----------------------------------------------------------
    h = jnp.maximum(x * bn1_s + bn1_b, 0.0)

    # ---- conv1 (1x1; bn2 scale folded into weight rows) + shift + relu -------
    h = jnp.dot(w1_ref[...], h, preferred_element_type=jnp.float32)
    h = jnp.maximum(h + bn2_b, 0.0)                  # (Cmid_p, N)

    # ---- conv2: 3x3 'same' as one im2col matmul ------------------------------
    # Shifted windows via XLU lane rotations; precomputed per-image edge masks.
    cols = []
    m = 0
    for dy in (-1, 0, 1):
        for dx in (-1, 0, 1):
            off = dy * img_w + dx
            if off == 0:
                cols.append(h)
            else:
                shifted = pltpu.roll(h, (-off) % n, 1)
                cols.append(shifted * mask_ref[m:m + 1, :])
                m += 1
    im2col = jnp.concatenate(cols, axis=0)           # (9*Cmid_p, N), vreg-aligned
    h = jnp.dot(w2_ref[...], im2col, preferred_element_type=jnp.float32)
    h = jnp.maximum(h + bn3_b, 0.0)                  # bn3 scale folded into w2

    # ---- conv3 (1x1) + folded bias + residual --------------------------------
    out = jnp.dot(w3_ref[...], h, preferred_element_type=jnp.float32) + b_out + residual
    out_ref[...] = out.astype(out_ref.dtype)


def _make_kernel(need_skip, cin, cmid_p, cout, img_w):
    if need_skip:
        def kernel(x_ref, mask_ref, pcol_ref, w1_ref, w2_ref, w3_ref,
                   skipw_ref, out_ref):
            _residual_body(cin, cmid_p, cout, img_w, x_ref, mask_ref, pcol_ref,
                           w1_ref, w2_ref, w3_ref, skipw_ref, out_ref)
    else:
        def kernel(x_ref, mask_ref, pcol_ref, w1_ref, w2_ref, w3_ref, out_ref):
            _residual_body(cin, cmid_p, cout, img_w, x_ref, mask_ref, pcol_ref,
                           w1_ref, w2_ref, w3_ref, None, out_ref)
    return kernel


# --------------------------------------------------------------------------- #
# Parameter preparation (folds + padding + packing)
# --------------------------------------------------------------------------- #
def _prep_params(params, need_skip):
    cin, cmid = params["w1"].shape
    cout = params["w3"].shape[1]
    cmid_p = ((cmid + 7) // 8) * 8                   # pad mid channels to 8 sublanes
    pad_m = cmid_p - cmid

    def vec(v):
        return jnp.reshape(jnp.asarray(v, jnp.float32), (-1,))

    bn1_s, bn1_b = vec(params["bn1_s"]), vec(params["bn1_b"])
    bn2_s, bn2_b = vec(params["bn2_s"]), vec(params["bn2_b"])
    bn3_s, bn3_b = vec(params["bn3_s"]), vec(params["bn3_b"])
    b1, b2, b3 = vec(params["b1"]), vec(params["b2"]), vec(params["b3"])

    # conv biases folded into the following BN shift; BN scales folded into the
    # preceding conv weight rows (inference-mode BN -> numerically identical).
    bn2_b = jnp.pad(bn2_b + bn2_s * b1, (0, pad_m))
    bn3_b = jnp.pad(bn3_b + bn3_s * b2, (0, pad_m))

    w1 = jnp.transpose(jnp.asarray(params["w1"], jnp.float32)) * bn2_s[:, None]
    w1 = jnp.pad(w1, ((0, pad_m), (0, 0)))                        # (Cmid_p, Cin)

    w2 = jnp.transpose(jnp.asarray(params["w2"], jnp.float32), (3, 0, 1, 2))
    w2 = w2 * bn3_s[:, None, None, None]                          # (Cmid,3,3,Cmid)
    w2 = jnp.pad(w2, ((0, pad_m), (0, 0), (0, 0), (0, pad_m)))
    w2 = w2.reshape(cmid_p, 9 * cmid_p)                           # (Cmid_p, 9*Cmid_p)

    w3 = jnp.pad(jnp.transpose(jnp.asarray(params["w3"], jnp.float32)),
                 ((0, 0), (0, pad_m)))                            # (Cout, Cmid_p)

    if need_skip:
        skip_w = jnp.transpose(jnp.asarray(params["skip_w"], jnp.float32))  # (Cout, Cin)
        b_out = b3 + vec(params["skip_b"])                        # fold skip bias
    else:
        skip_w = None
        b_out = b3

    # Pack all per-channel columns into one small slab (one DMA, one VMEM tile).
    cmax = max(cin, cmid_p, cout)

    def colpad(v):
        return jnp.pad(v, (0, cmax - v.shape[0]))

    pcol = jnp.stack([colpad(bn1_s), colpad(bn1_b), colpad(bn2_b),
                      colpad(bn3_b), colpad(b_out)], axis=1)      # (Cmax, 5)

    return (pcol, w1, w2, w3, skip_w), cin, cmid_p, cout


# --------------------------------------------------------------------------- #
# Wrapper
# --------------------------------------------------------------------------- #
def residual_forward(x_nchw, params, need_skip):
    """NCHW in / NCHW out. Kernel works on channel-major (C, Bt*HW) chunks."""
    B, Cin, H, W = x_nchw.shape
    HW = H * W
    (pcol, w1, w2, w3, skip_w), cin, cmid_p, cout = _prep_params(params, need_skip)
    assert cin == Cin
    if not need_skip:
        assert Cin == cout, "identity skip requires inp_dim == out_dim"

    # --- batch chunking: wide lane axis per step, >=2 parallel steps when B>=2
    bytes_im2col = 4 * 9 * cmid_p * HW               # dominant live slab per image
    bt_cap = max(1, (8 << 20) // bytes_im2col)       # keep im2col <= ~8 MiB
    bt = min(bt_cap, pl.cdiv(B, 2)) if B >= 2 else B
    if bt != B and (bt * HW) % 128 != 0:             # lane-tiling rule fallback
        bt = B
    steps = pl.cdiv(B, bt)
    Bp = steps * bt
    n_chunk = bt * HW

    # Channel-major, lane-dense layout (pad batch to a multiple of the chunk).
    xb = x_nchw.astype(jnp.float32).reshape(B, Cin, HW)
    if Bp != B:
        xb = jnp.pad(xb, ((0, Bp - B), (0, 0), (0, 0)))
    x_cm = jnp.transpose(xb, (1, 0, 2)).reshape(Cin, Bp * HW)

    # Precomputed edge masks for the 8 off-center 3x3 taps (per-image coords,
    # so lane-roll wraparound across image boundaries is always masked).
    pos = jnp.arange(n_chunk, dtype=jnp.int32) % HW
    yy = pos // W
    xx = pos % W
    rows = []
    for dy in (-1, 0, 1):
        for dx in (-1, 0, 1):
            if dy == 0 and dx == 0:
                continue
            rows.append((yy + dy >= 0) & (yy + dy < H) &
                        (xx + dx >= 0) & (xx + dx < W))
    mask = jnp.stack(rows, axis=0).astype(jnp.float32)            # (8, Bt*HW)

    kernel = _make_kernel(need_skip, cin, cmid_p, cout, W)

    def const_spec(a):
        return pl.BlockSpec(a.shape, lambda i: (0, 0))

    in_arrays = [x_cm, mask, pcol, w1, w2, w3]
    in_specs = [pl.BlockSpec((Cin, n_chunk), lambda i: (0, i)),
                const_spec(mask), const_spec(pcol),
                const_spec(w1), const_spec(w2), const_spec(w3)]
    if need_skip:
        in_arrays.append(skip_w)
        in_specs.append(const_spec(skip_w))

    flops = 2 * Bp * HW * (Cin * cmid_p + 9 * cmid_p * cmid_p + cmid_p * cout
                           + (Cin * cout if need_skip else 0))
    bytes_accessed = 4 * (Bp * HW * (Cin + cout)
                          + sum(int(a.size) for a in in_arrays[1:]))

    out_cm = pl.pallas_call(
        kernel,
        out_shape=jax.ShapeDtypeStruct((cout, Bp * HW), jnp.float32),
        grid=(steps,),
        in_specs=in_specs,
        out_specs=pl.BlockSpec((cout, n_chunk), lambda i: (0, i)),
        compiler_params=pltpu.CompilerParams(
            dimension_semantics=("parallel",)),
        cost_estimate=pl.CostEstimate(flops=flops, transcendentals=0,
                                      bytes_accessed=bytes_accessed),
    )(*in_arrays)

    out = out_cm.reshape(cout, Bp, HW).transpose(1, 0, 2)[:B]
    return out.reshape(B, cout, H, W)


# --------------------------------------------------------------------------- #
# Synthetic params + pure-JAX reference
# --------------------------------------------------------------------------- #
def make_params(key, cin, cout):
    """Deterministic synthetic parameters (shapes follow Residual.__init__)."""
    cmid = cout // 2
    eps = 1e-5
    keys = jax.random.split(key, 20)
    it = iter(keys)

    def u(shape, scale=0.1):
        return (jax.random.uniform(next(it), shape, jnp.float32) - 0.5) * 2.0 * scale

    def bn_fold(c):
        gamma = 1.0 + u((c,))
        beta = u((c,))
        mean = u((c,))
        var = jax.random.uniform(next(it), (c,), jnp.float32, minval=0.5, maxval=1.5)
        s = gamma / jnp.sqrt(var + eps)
        b = beta - mean * s
        return s.reshape(1, c), b.reshape(1, c)

    bn1_s, bn1_b = bn_fold(cin)
    bn2_s, bn2_b = bn_fold(cmid)
    bn3_s, bn3_b = bn_fold(cmid)

    return {
        "bn1_s": bn1_s, "bn1_b": bn1_b,
        "bn2_s": bn2_s, "bn2_b": bn2_b,
        "bn3_s": bn3_s, "bn3_b": bn3_b,
        "skip_w": u((cin, cout), 0.3), "skip_b": u((1, cout), 0.1),
        "w1": u((cin, cmid), 0.3), "b1": u((1, cmid), 0.1),
        "w2": u((3, 3, cmid, cmid), 0.3), "b2": u((1, cmid), 0.1),
        "w3": u((cmid, cout), 0.3), "b3": u((1, cout), 0.1),
    }


def ref_forward(x_nchw, params, need_skip):
    """Plain-JAX reference (NCHW, lax conv) for correctness checking."""
    def conv1x1(x, w, b):  # w: (Cin, Cout)
        wk = jnp.transpose(w)[:, :, None, None]
        y = jax.lax.conv_general_dilated(
            x, wk, (1, 1), "SAME", dimension_numbers=("NCHW", "OIHW", "NCHW"))
        return y + b.reshape(1, -1, 1, 1)

    def conv3x3(x, w, b):  # w: (3, 3, Cin, Cout)
        wk = jnp.transpose(w, (3, 2, 0, 1))
        y = jax.lax.conv_general_dilated(
            x, wk, (1, 1), "SAME", dimension_numbers=("NCHW", "OIHW", "NCHW"))
        return y + b.reshape(1, -1, 1, 1)

    def bnrelu(x, s, b):
        return jnp.maximum(x * s.reshape(1, -1, 1, 1) + b.reshape(1, -1, 1, 1), 0.0)

    residual = conv1x1(x_nchw, params["skip_w"], params["skip_b"]) if need_skip else x_nchw
    h = bnrelu(x_nchw, params["bn1_s"], params["bn1_b"])
    h = conv1x1(h, params["w1"], params["b1"])
    h = bnrelu(h, params["bn2_s"], params["bn2_b"])
    h = conv3x3(h, params["w2"], params["b2"])
    h = bnrelu(h, params["bn3_s"], params["bn3_b"])
    h = conv1x1(h, params["w3"], params["b3"])
    return h + residual


if __name__ == "__main__":
    key = jax.random.PRNGKey(0)
    k_x, k_p1, k_p2 = jax.random.split(key, 3)

    B, H, W = 2, 16, 16

    # Case 1: inp_dim != out_dim -> skip 1x1 conv is active.
    Cin, Cout = 4, 8
    x = jax.random.normal(k_x, (B, Cin, H, W), jnp.float32)
    params = make_params(k_p1, Cin, Cout)
    out = jax.block_until_ready(residual_forward(x, params, need_skip=True))
    ref = ref_forward(x, params, True)
    assert out.shape == (B, Cout, H, W), out.shape
    err1 = float(jnp.max(jnp.abs(out - ref)))
    assert jnp.allclose(out, ref, atol=1e-4, rtol=1e-4), err1

    # Case 2: inp_dim == out_dim -> identity skip.
    Cin2 = Cout2 = 8
    x2 = jax.random.normal(k_x, (B, Cin2, H, W), jnp.float32)
    params2 = make_params(k_p2, Cin2, Cout2)
    out2 = jax.block_until_ready(residual_forward(x2, params2, need_skip=False))
    ref2 = ref_forward(x2, params2, False)
    assert out2.shape == (B, Cout2, H, W), out2.shape
    err2 = float(jnp.max(jnp.abs(out2 - ref2)))
    assert jnp.allclose(out2, ref2, atol=1e-4, rtol=1e-4), err2

    print("KERNEL_OK")
</pallas_src>

<mosaic_0001>
module attributes {stable_mosaic.version = 11 : i64} {
  func.func @kernel(%arg0: i32, %arg1: memref<4x256xf32, #tpu.memory_space<vmem>>, %arg2: memref<8x256xf32, #tpu.memory_space<vmem>>, %arg3: memref<8x5xf32, #tpu.memory_space<vmem>>, %arg4: memref<8x4xf32, #tpu.memory_space<vmem>>, %arg5: memref<8x72xf32, #tpu.memory_space<vmem>>, %arg6: memref<8x8xf32, #tpu.memory_space<vmem>>, %arg7: memref<8x4xf32, #tpu.memory_space<vmem>>, %arg8: memref<8x256xf32, #tpu.memory_space<vmem>>) attributes {dimension_semantics = [#tpu.dimension_semantics<parallel>], iteration_bounds = array<i64: 2>, scalar_prefetch = 0 : i64, scratch_operands = 0 : i64, tpu.core_type = #tpu.core_type<tc>, window_params = [{transform_indices = @transform_0, window_bounds = array<i64: 4, 256>}, {pipeline_mode = #tpu.pipeline_mode<synchronous>, transform_indices = @transform_1, window_bounds = array<i64: 8, 256>}, {pipeline_mode = #tpu.pipeline_mode<synchronous>, transform_indices = @transform_2, window_bounds = array<i64: 8, 5>}, {pipeline_mode = #tpu.pipeline_mode<synchronous>, transform_indices = @transform_3, window_bounds = array<i64: 8, 4>}, {pipeline_mode = #tpu.pipeline_mode<synchronous>, transform_indices = @transform_4, window_bounds = array<i64: 8, 72>}, {pipeline_mode = #tpu.pipeline_mode<synchronous>, transform_indices = @transform_5, window_bounds = array<i64: 8, 8>}, {pipeline_mode = #tpu.pipeline_mode<synchronous>, transform_indices = @transform_6, window_bounds = array<i64: 8, 4>}, {transform_indices = @transform_7, window_bounds = array<i64: 8, 256>}]} {
    %c0 = arith.constant 0 : index
    %c0_0 = arith.constant 0 : index
    %0 = vector.load %arg1[%c0, %c0_0] : memref<4x256xf32, #tpu.memory_space<vmem>>, vector<4x256xf32>
    %c0_1 = arith.constant 0 : index
    %c0_2 = arith.constant 0 : index
    %1 = vector.load %arg3[%c0_1, %c0_2] : memref<8x5xf32, #tpu.memory_space<vmem>>, vector<4x1xf32>
    %c0_3 = arith.constant 0 : index
    %c1 = arith.constant 1 : index
    %2 = vector.load %arg3[%c0_3, %c1] : memref<8x5xf32, #tpu.memory_space<vmem>>, vector<4x1xf32>
    %c0_4 = arith.constant 0 : index
    %c2 = arith.constant 2 : index
    %3 = vector.load %arg3[%c0_4, %c2] : memref<8x5xf32, #tpu.memory_space<vmem>>, vector<8x1xf32>
    %c0_5 = arith.constant 0 : index
    %c3 = arith.constant 3 : index
    %4 = vector.load %arg3[%c0_5, %c3] : memref<8x5xf32, #tpu.memory_space<vmem>>, vector<8x1xf32>
    %c0_6 = arith.constant 0 : index
    %c4 = arith.constant 4 : index
    %5 = vector.load %arg3[%c0_6, %c4] : memref<8x5xf32, #tpu.memory_space<vmem>>, vector<8x1xf32>
    %c0_7 = arith.constant 0 : index
    %c0_8 = arith.constant 0 : index
    %6 = vector.load %arg7[%c0_7, %c0_8] : memref<8x4xf32, #tpu.memory_space<vmem>>, vector<8x4xf32>
    %cst = arith.constant dense<0.000000e+00> : vector<8x256xf32>
    %7 = tpu.matmul %6, %0, %cst {dimension_numbers = #tpu.dot_dimension_numbers<[1], [0], [0], [1], [0, 0, 1, 1], [], []>} : vector<8x4xf32>, vector<4x256xf32>, vector<8x256xf32> -> vector<8x256xf32>
    %8 = vector.broadcast %1 : vector<4x1xf32> to vector<4x256xf32>
    %9 = arith.mulf %0, %8 : vector<4x256xf32>
    %10 = vector.broadcast %2 : vector<4x1xf32> to vector<4x256xf32>
    %11 = arith.addf %9, %10 : vector<4x256xf32>
    %cst_9 = arith.constant 0.000000e+00 : f32
    %12 = vector.broadcast %cst_9 : f32 to vector<4x256xf32>
    %13 = arith.maximumf %11, %12 : vector<4x256xf32>
    %c0_10 = arith.constant 0 : index
    %c0_11 = arith.constant 0 : index
    %14 = vector.load %arg4[%c0_10, %c0_11] : memref<8x4xf32, #tpu.memory_space<vmem>>, vector<8x4xf32>
    %cst_12 = arith.constant dense<0.000000e+00> : vector<8x256xf32>
    %15 = tpu.matmul %14, %13, %cst_12 {dimension_numbers = #tpu.dot_dimension_numbers<[1], [0], [0], [1], [0, 0, 1, 1], [], []>} : vector<8x4xf32>, vector<4x256xf32>, vector<8x256xf32> -> vector<8x256xf32>
    %16 = vector.broadcast %3 : vector<8x1xf32> to vector<8x256xf32>
    %17 = arith.addf %15, %16 : vector<8x256xf32>
    %cst_13 = arith.constant 0.000000e+00 : f32
    %18 = vector.broadcast %cst_13 : f32 to vector<8x256xf32>
    %19 = arith.maximumf %17, %18 : vector<8x256xf32>
    %c17_i32 = arith.constant 17 : i32
    %20 = tpu.dynamic_rotate %19 by %c17_i32 dim 1 : vector<8x256xf32>, i32 -> vector<8x256xf32>
    %c0_14 = arith.constant 0 : index
    %c0_15 = arith.constant 0 : index
    %21 = vector.load %arg2[%c0_14, %c0_15] : memref<8x256xf32, #tpu.memory_space<vmem>>, vector<1x256xf32>
    %22 = vector.broadcast %21 : vector<1x256xf32> to vector<8x256xf32>
    %23 = arith.mulf %20, %22 : vector<8x256xf32>
    %c16_i32 = arith.constant 16 : i32
    %24 = tpu.dynamic_rotate %19 by %c16_i32 dim 1 : vector<8x256xf32>, i32 -> vector<8x256xf32>
    %c1_16 = arith.constant 1 : index
    %c0_17 = arith.constant 0 : index
    %25 = vector.load %arg2[%c1_16, %c0_17] : memref<8x256xf32, #tpu.memory_space<vmem>>, vector<1x256xf32>
    %26 = vector.broadcast %25 : vector<1x256xf32> to vector<8x256xf32>
    %27 = arith.mulf %24, %26 : vector<8x256xf32>
    %c15_i32 = arith.constant 15 : i32
    %28 = tpu.dynamic_rotate %19 by %c15_i32 dim 1 : vector<8x256xf32>, i32 -> vector<8x256xf32>
    %c2_18 = arith.constant 2 : index
    %c0_19 = arith.constant 0 : index
    %29 = vector.load %arg2[%c2_18, %c0_19] : memref<8x256xf32, #tpu.memory_space<vmem>>, vector<1x256xf32>
    %30 = vector.broadcast %29 : vector<1x256xf32> to vector<8x256xf32>
    %31 = arith.mulf %28, %30 : vector<8x256xf32>
    %c1_i32 = arith.constant 1 : i32
    %32 = tpu.dynamic_rotate %19 by %c1_i32 dim 1 : vector<8x256xf32>, i32 -> vector<8x256xf32>
    %c3_20 = arith.constant 3 : index
    %c0_21 = arith.constant 0 : index
    %33 = vector.load %arg2[%c3_20, %c0_21] : memref<8x256xf32, #tpu.memory_space<vmem>>, vector<1x256xf32>
    %34 = vector.broadcast %33 : vector<1x256xf32> to vector<8x256xf32>
    %35 = arith.mulf %32, %34 : vector<8x256xf32>
    %c255_i32 = arith.constant 255 : i32
    %36 = tpu.dynamic_rotate %19 by %c255_i32 dim 1 : vector<8x256xf32>, i32 -> vector<8x256xf32>
    %c4_22 = arith.constant 4 : index
    %c0_23 = arith.constant 0 : index
    %37 = vector.load %arg2[%c4_22, %c0_23] : memref<8x256xf32, #tpu.memory_space<vmem>>, vector<1x256xf32>
    %38 = vector.broadcast %37 : vector<1x256xf32> to vector<8x256xf32>
    %39 = arith.mulf %36, %38 : vector<8x256xf32>
    %c241_i32 = arith.constant 241 : i32
    %40 = tpu.dynamic_rotate %19 by %c241_i32 dim 1 : vector<8x256xf32>, i32 -> vector<8x256xf32>
    %c5 = arith.constant 5 : index
    %c0_24 = arith.constant 0 : index
    %41 = vector.load %arg2[%c5, %c0_24] : memref<8x256xf32, #tpu.memory_space<vmem>>, vector<1x256xf32>
    %42 = vector.broadcast %41 : vector<1x256xf32> to vector<8x256xf32>
    %43 = arith.mulf %40, %42 : vector<8x256xf32>
    %c240_i32 = arith.constant 240 : i32
    %44 = tpu.dynamic_rotate %19 by %c240_i32 dim 1 : vector<8x256xf32>, i32 -> vector<8x256xf32>
    %c6 = arith.constant 6 : index
    %c0_25 = arith.constant 0 : index
    %45 = vector.load %arg2[%c6, %c0_25] : memref<8x256xf32, #tpu.memory_space<vmem>>, vector<1x256xf32>
    %46 = vector.broadcast %45 : vector<1x256xf32> to vector<8x256xf32>
    %47 = arith.mulf %44, %46 : vector<8x256xf32>
    %c239_i32 = arith.constant 239 : i32
    %48 = tpu.dynamic_rotate %19 by %c239_i32 dim 1 : vector<8x256xf32>, i32 -> vector<8x256xf32>
    %c7 = arith.constant 7 : index
    %c0_26 = arith.constant 0 : index
    %49 = vector.load %arg2[%c7, %c0_26] : memref<8x256xf32, #tpu.memory_space<vmem>>, vector<1x256xf32>
    %50 = vector.broadcast %49 : vector<1x256xf32> to vector<8x256xf32>
    %51 = arith.mulf %48, %50 : vector<8x256xf32>
    %52 = tpu.concatenate %23, %27, %31, %35, %19, %39, %43, %47, %51 in 0 : vector<8x256xf32>, vector<8x256xf32>, vector<8x256xf32>, vector<8x256xf32>, vector<8x256xf32>, vector<8x256xf32>, vector<8x256xf32>, vector<8x256xf32>, vector<8x256xf32> -> vector<72x256xf32>
    %c0_27 = arith.constant 0 : index
    %c0_28 = arith.constant 0 : index
    %53 = vector.load %arg5[%c0_27, %c0_28] : memref<8x72xf32, #tpu.memory_space<vmem>>, vector<8x72xf32>
    %cst_29 = arith.constant dense<0.000000e+00> : vector<8x256xf32>
    %54 = tpu.matmul %53, %52, %cst_29 {dimension_numbers = #tpu.dot_dimension_numbers<[1], [0], [0], [1], [0, 0, 1, 1], [], []>} : vector<8x72xf32>, vector<72x256xf32>, vector<8x256xf32> -> vector<8x256xf32>
    %55 = vector.broadcast %4 : vector<8x1xf32> to vector<8x256xf32>
    %56 = arith.addf %54, %55 : vector<8x256xf32>
    %cst_30 = arith.constant 0.000000e+00 : f32
    %57 = vector.broadcast %cst_30 : f32 to vector<8x256xf32>
    %58 = arith.maximumf %56, %57 : vector<8x256xf32>
    %c0_31 = arith.constant 0 : index
    %c0_32 = arith.constant 0 : index
    %59 = vector.load %arg6[%c0_31, %c0_32] : memref<8x8xf32, #tpu.memory_space<vmem>>, vector<8x8xf32>
    %cst_33 = arith.constant dense<0.000000e+00> : vector<8x256xf32>
    %60 = tpu.matmul %59, %58, %cst_33 {dimension_numbers = #tpu.dot_dimension_numbers<[1], [0], [0], [1], [0, 0, 1, 1], [], []>} : vector<8x8xf32>, vector<8x256xf32>, vector<8x256xf32> -> vector<8x256xf32>
    %61 = vector.broadcast %5 : vector<8x1xf32> to vector<8x256xf32>
    %62 = arith.addf %60, %61 : vector<8x256xf32>
    %63 = arith.addf %62, %7 : vector<8x256xf32>
    %c0_34 = arith.constant 0 : index
    %c0_35 = arith.constant 0 : index
    %64 = vector.load %arg8[%c0_34, %c0_35] : memref<8x256xf32, #tpu.memory_space<vmem>>, vector<8x256xf32>
    tpu.vector_store %arg8[%c0_34, %c0_35], %63 {strides = array<i32>} : memref<8x256xf32, #tpu.memory_space<vmem>>, vector<8x256xf32>,
    return
  }
  func.func @transform_0(%arg0: i32) -> (i32, i32) {
    %c0_i32 = arith.constant 0 : i32
    %c0_i32_0 = arith.constant 0 : i32
    return %c0_i32, %arg0 : i32, i32
  }
  func.func @transform_1(%arg0: i32) -> (i32, i32) {
    %c0_i32 = arith.constant 0 : i32
    %c0_i32_0 = arith.constant 0 : i32
    %c0_i32_1 = arith.constant 0 : i32
    return %c0_i32, %c0_i32_0 : i32, i32
  }
  func.func @transform_2(%arg0: i32) -> (i32, i32) {
    %c0_i32 = arith.constant 0 : i32
    %c0_i32_0 = arith.constant 0 : i32
    %c0_i32_1 = arith.constant 0 : i32
    return %c0_i32, %c0_i32_0 : i32, i32
  }
  func.func @transform_3(%arg0: i32) -> (i32, i32) {
    %c0_i32 = arith.constant 0 : i32
    %c0_i32_0 = arith.constant 0 : i32
    %c0_i32_1 = arith.constant 0 : i32
    return %c0_i32, %c0_i32_0 : i32, i32
  }
  func.func @transform_4(%arg0: i32) -> (i32, i32) {
    %c0_i32 = arith.constant 0 : i32
    %c0_i32_0 = arith.constant 0 : i32
    %c0_i32_1 = arith.constant 0 : i32
    return %c0_i32, %c0_i32_0 : i32, i32
  }
  func.func @transform_5(%arg0: i32) -> (i32, i32) {
    %c0_i32 = arith.constant 0 : i32
    %c0_i32_0 = arith.constant 0 : i32
    %c0_i32_1 = arith.constant 0 : i32
    return %c0_i32, %c0_i32_0 : i32, i32
  }
  func.func @transform_6(%arg0: i32) -> (i32, i32) {
    %c0_i32 = arith.constant 0 : i32
    %c0_i32_0 = arith.constant 0 : i32
    %c0_i32_1 = arith.constant 0 : i32
    return %c0_i32, %c0_i32_0 : i32, i32
  }
  func.func @transform_7(%arg0: i32) -> (i32, i32) {
    %c0_i32 = arith.constant 0 : i32
    %c0_i32_0 = arith.constant 0 : i32
    return %c0_i32, %arg0 : i32, i32
  }
}

</mosaic_0001>

<llo_original>
// kernel: tpu_custom_call.1
$region0: #{tpu_custom_call.1}
  #allocation0 [shape = 'u32[]', space=smem, size = 0x4, offset = 0x4, fixed_abs, tag = 'smem constant byte address 0x4 - core index']
  #allocation1 [shape = 'u32[144,128]{1,0:T(1,128)}', space=vmem, size = 0x12000, scoped, tag = 'internal scratch']
  %s0 = inlined_call_operand.vmem [shape: f32[4,512], index: 0, kind: input, shape index: {}]
  %s1 = inlined_call_operand.hbm [shape: f32[8,256], index: 1, kind: input, shape index: {}]
  %s2 = inlined_call_operand.vmem [shape: f32[8,5], index: 2, kind: input, shape index: {}]
  %s3 = inlined_call_operand.vmem [shape: f32[8,4], index: 3, kind: input, shape index: {}]
  %s4 = inlined_call_operand.vmem [shape: f32[8,72], index: 4, kind: input, shape index: {}]
  %s5 = inlined_call_operand.vmem [shape: f32[8,8], index: 5, kind: input, shape index: {}]
  %s6 = inlined_call_operand.vmem [shape: f32[8,4], index: 6, kind: input, shape index: {}]
  %s7 = inlined_call_operand.hbm [shape: f32[8,512], index: 7, kind: output, shape index: {}]
  %s8 = sld [smem:[#allocation0]]
  $region65: #{tpu_custom_call.1} parent=0
    _
  %s10 = ssub.s32 1, %s8
  %s11 = scalar_select 0, %s10, %s8
  $region1: #{tpu_custom_call.1} parent=0
    #allocation2 [shape = 'u8[8192]{0}', space=vmem, size = 0x2000, scoped, tag = 'input window, operand 1, single buffered']
    #allocation3 [shape = 's32[2]{0}', space=sflag, size = 0x8, scoped, tag = 'scoped memory for tpu_custom_call.1']
    #allocation4 [shape = 's32[2]{0}', space=sflag, size = 0x8, scoped, tag = 'scoped memory for tpu_custom_call.1']
    #allocation5 [shape = 'u8[16384]{0}', space=vmem, size = 0x4000, scoped, tag = 'output window, operand 0']
    %12 = vsyncpa [#allocation3], 0
    %13 = vsyncpa [#allocation4], 0
    %s14 = scalar_lea.sflag [#allocation4], 1
    %15 = vsyncpa %s14, 0
    loop: start=0, step=1, limit=4
    $region2: #{tpu_custom_call.1} parent=1 // loop_pre_header
      _
    $region3: #{tpu_custom_call.1} parent=1 // loop_header
      %s17 = sphi 0, %s21
      %p18 = scmp.ge.s32.totalorder %s17, 4
      %s27 = sphi 0, %s29
      %s30 = sphi 0, %s27
      %s31 = sphi 0, %s30
      %s47 = sphi 0, %s31
      %s51 = sphi 0, %s51
      %s53 = sphi 0, %s51
      %s54 = sphi 0, %s53
      %s68 = sphi 0, %s54
      %s72 = sphi 0, %s72
      %s74 = sphi 0, %s72
      %s75 = sphi 0, %s74
      %s89 = sphi 0, %s75
      %s93 = sphi 0, %s93
      %s95 = sphi 0, %s93
      %s96 = sphi 0, %s95
      %s110 = sphi 0, %s96
      %s114 = sphi 0, %s114
      %s116 = sphi 0, %s114
      %s117 = sphi 0, %s116
      %s131 = sphi 0, %s117
      %s135 = sphi 0, %s135
      %s137 = sphi 0, %s135
      %s138 = sphi 0, %s137
      %s152 = sphi 0, %s138
      %s156 = sphi 0, %s156
      %s158 = sphi 0, %s156
      %s159 = sphi 0, %s158
      %s173 = sphi 0, %s159
      %s179 = sphi 0, %s181
      %s182 = sphi 0, %s179
      %s183 = sphi 0, %s182
      %s199 = sphi 0, %s183
    $region4: #{tpu_custom_call.1} parent=1 // loop_header_branch
      %20 = sbr.rel (%p18) target = $region8
    $region5: #{tpu_custom_call.1} parent=1 // loop_body
      %s22 = ssub.s32 %s17, 1
      %s23 = ssub.s32 %s17, 2
      %s24 = sadd.s32 %s17, 1
      %s25 = ssub.s32 %s17, %s24
      %p26 = scmp.eq.s32.totalorder %s25, 0
      %s28 = sadd.s32 %s27, 1
      %s29 = scalar_select %p26, %s27, %s28
      %p32 = pneg %p26
      %p33 = scmp.eq.s32.totalorder %s17, 1
      %p34 = por %p32, %p33
      %p35 = scmp.ne.s32.totalorder %s27, %s30
      %p36 = scmp.eq.s32.totalorder %s17, 0
      %p37 = por %p35, %p36
      %p38 = scmp.ne.s32.totalorder %s27, %s30
      %p39 = scmp.eq.s32.totalorder %s22, 1
      %p40 = por %p38, %p39
      %p41 = scmp.ne.s32.totalorder %s30, %s31
      %p42 = scmp.eq.s32.totalorder %s22, 0
      %p43 = por %p41, %p42
      %p44 = scmp.ne.s32.totalorder %s30, %s31
      %p45 = scmp.eq.s32.totalorder %s23, 1
      %p46 = por %p44, %p45
      %p48 = scmp.ne.s32.totalorder %s31, %s47
      %p49 = scmp.eq.s32.totalorder %s23, 0
      %p50 = por %p48, %p49
      %s52 = sadd.s32 %s51, 1
      %p55 = scmp.eq.s32.totalorder %s17, 1
      %p56 = scmp.ne.s32.totalorder %s51, %s53
      %p57 = scmp.eq.s32.totalorder %s17, 0
      %p58 = por %p56, %p57
      %p59 = scmp.ne.s32.totalorder %s51, %s53
      %p60 = scmp.eq.s32.totalorder %s22, 1
      %p61 = por %p59, %p60
      %p62 = scmp.ne.s32.totalorder %s53, %s54
      %p63 = scmp.eq.s32.totalorder %s22, 0
      %p64 = por %p62, %p63
      %p65 = scmp.ne.s32.totalorder %s53, %s54
      %p66 = scmp.eq.s32.totalorder %s23, 1
      %p67 = por %p65, %p66
      %p69 = scmp.ne.s32.totalorder %s54, %s68
      %p70 = scmp.eq.s32.totalorder %s23, 0
      %p71 = por %p69, %p70
      %s73 = sadd.s32 %s72, 1
      %p76 = scmp.eq.s32.totalorder %s17, 1
      %p77 = scmp.ne.s32.totalorder %s72, %s74
      %p78 = scmp.eq.s32.totalorder %s17, 0
      %p79 = por %p77, %p78
      %p80 = scmp.ne.s32.totalorder %s72, %s74
      %p81 = scmp.eq.s32.totalorder %s22, 1
      %p82 = por %p80, %p81
      %p83 = scmp.ne.s32.totalorder %s74, %s75
      %p84 = scmp.eq.s32.totalorder %s22, 0
      %p85 = por %p83, %p84
      %p86 = scmp.ne.s32.totalorder %s74, %s75
      %p87 = scmp.eq.s32.totalorder %s23, 1
      %p88 = por %p86, %p87
      %p90 = scmp.ne.s32.totalorder %s75, %s89
      %p91 = scmp.eq.s32.totalorder %s23, 0
      %p92 = por %p90, %p91
      %s94 = sadd.s32 %s93, 1
      %p97 = scmp.eq.s32.totalorder %s17, 1
      %p98 = scmp.ne.s32.totalorder %s93, %s95
      %p99 = scmp.eq.s32.totalorder %s17, 0
      %p100 = por %p98, %p99
      %p101 = scmp.ne.s32.totalorder %s93, %s95
      %p102 = scmp.eq.s32.totalorder %s22, 1
      %p103 = por %p101, %p102
      %p104 = scmp.ne.s32.totalorder %s95, %s96
      %p105 = scmp.eq.s32.totalorder %s22, 0
      %p106 = por %p104, %p105
      %p107 = scmp.ne.s32.totalorder %s95, %s96
      %p108 = scmp.eq.s32.totalorder %s23, 1
      %p109 = por %p107, %p108
      %p111 = scmp.ne.s32.totalorder %s96, %s110
      %p112 = scmp.eq.s32.totalorder %s23, 0
      %p113 = por %p111, %p112
      %s115 = sadd.s32 %s114, 1
      %p118 = scmp.eq.s32.totalorder %s17, 1
      %p119 = scmp.ne.s32.totalorder %s114, %s116
      %p120 = scmp.eq.s32.totalorder %s17, 0
      %p121 = por %p119, %p120
      %p122 = scmp.ne.s32.totalorder %s114, %s116
      %p123 = scmp.eq.s32.totalorder %s22, 1
      %p124 = por %p122, %p123
      %p125 = scmp.ne.s32.totalorder %s116, %s117
      %p126 = scmp.eq.s32.totalorder %s22, 0
      %p127 = por %p125, %p126
      %p128 = scmp.ne.s32.totalorder %s116, %s117
      %p129 = scmp.eq.s32.totalorder %s23, 1
      %p130 = por %p128, %p129
      %p132 = scmp.ne.s32.totalorder %s117, %s131
      %p133 = scmp.eq.s32.totalorder %s23, 0
      %p134 = por %p132, %p133
      %s136 = sadd.s32 %s135, 1
      %p139 = scmp.eq.s32.totalorder %s17, 1
      %p140 = scmp.ne.s32.totalorder %s135, %s137
      %p141 = scmp.eq.s32.totalorder %s17, 0
      %p142 = por %p140, %p141
      %p143 = scmp.ne.s32.totalorder %s135, %s137
      %p144 = scmp.eq.s32.totalorder %s22, 1
      %p145 = por %p143, %p144
      %p146 = scmp.ne.s32.totalorder %s137, %s138
      %p147 = scmp.eq.s32.totalorder %s22, 0
      %p148 = por %p146, %p147
      %p149 = scmp.ne.s32.totalorder %s137, %s138
      %p150 = scmp.eq.s32.totalorder %s23, 1
      %p151 = por %p149, %p150
      %p153 = scmp.ne.s32.totalorder %s138, %s152
      %p154 = scmp.eq.s32.totalorder %s23, 0
      %p155 = por %p153, %p154
      %s157 = sadd.s32 %s156, 1
      %p160 = scmp.eq.s32.totalorder %s17, 1
      %p161 = scmp.ne.s32.totalorder %s156, %s158
      %p162 = scmp.eq.s32.totalorder %s17, 0
      %p163 = por %p161, %p162
      %p164 = scmp.ne.s32.totalorder %s156, %s158
      %p165 = scmp.eq.s32.totalorder %s22, 1
      %p166 = por %p164, %p165
      %p167 = scmp.ne.s32.totalorder %s158, %s159
      %p168 = scmp.eq.s32.totalorder %s22, 0
      %p169 = por %p167, %p168
      %p170 = scmp.ne.s32.totalorder %s158, %s159
      %p171 = scmp.eq.s32.totalorder %s23, 1
      %p172 = por %p170, %p171
      %p174 = scmp.ne.s32.totalorder %s159, %s173
      %p175 = scmp.eq.s32.totalorder %s23, 0
      %p176 = por %p174, %p175
      %s177 = ssub.s32 %s17, %s24
      %p178 = scmp.eq.s32.totalorder %s177, 0
      %s180 = sadd.s32 %s179, 1
      %s181 = scalar_select %p178, %s179, %s180
      %p184 = pneg %p178
      %p185 = scmp.eq.s32.totalorder %s17, 1
      %p186 = por %p184, %p185
      %p187 = scmp.ne.s32.totalorder %s179, %s182
      %p188 = scmp.eq.s32.totalorder %s17, 0
      %p189 = por %p187, %p188
      %p190 = scmp.ne.s32.totalorder %s179, %s182
      %p191 = scmp.eq.s32.totalorder %s22, 1
      %p192 = por %p190, %p191
      %p193 = scmp.ne.s32.totalorder %s182, %s183
      %p194 = scmp.eq.s32.totalorder %s22, 0
      %p195 = por %p193, %p194
      %p196 = scmp.ne.s32.totalorder %s182, %s183
      %p197 = scmp.eq.s32.totalorder %s23, 1
      %p198 = por %p196, %p197
      %p200 = scmp.ne.s32.totalorder %s183, %s199
      %p201 = scmp.eq.s32.totalorder %s23, 0
      %p202 = por %p200, %p201
      %p203 = scmp.le.s32.totalorder 1, %s17
      %p204 = scmp.lt.s32.totalorder %s17, 3
      %p205 = pnand %p203, %p204
      %p206 = pneg %p205
      // Predicated region
      $region9: #{tpu_custom_call.1} parent=5 // pred_check
        _
      $region10: #{tpu_custom_call.1} parent=5 // pred_check_branch
        %208 = sbr.rel (%p205) target = $region12
      $region11: #{tpu_custom_call.1} parent=5 // pred_region
        %s209 = ssub.s32 %s17, 1
        // Predicated region
        $region13: #{tpu_custom_call.1} parent=11 // pred_check
          %p210 = pneg %p64
        $region14: #{tpu_custom_call.1} parent=11 // pred_check_branch
          %212 = sbr.rel (%p210) target = $region16
        $region15: #{tpu_custom_call.1} parent=11 // pred_region
          %s214 = ssub.s32 256, 256
          %215 = vsyncadd [#allocation3], %s214
          %s217 = sshll.u32 [#allocation2], 4
          %s218 = int_to_ptr.vmem [resolvable:$true] %s217
          %220 = dma.hbm_to_vmem [thread:$0]  %s1, 256, %s218, [#allocation3]
        $region16: #{tpu_custom_call.1} parent=11 // pred_fallthru
          _
        // Predicated region
        $region17: #{tpu_custom_call.1} parent=11 // pred_check
          %p221 = pneg %p85
        $region18: #{tpu_custom_call.1} parent=11 // pred_check_branch
          %223 = sbr.rel (%p221) target = $region20
        $region19: #{tpu_custom_call.1} parent=11 // pred_region
          _
        $region20: #{tpu_custom_call.1} parent=11 // pred_fallthru
          _
        // Predicated region
        $region21: #{tpu_custom_call.1} parent=11 // pred_check
          %p224 = pneg %p106
        $region22: #{tpu_custom_call.1} parent=11 // pred_check_branch
          %226 = sbr.rel (%p224) target = $region24
        $region23: #{tpu_custom_call.1} parent=11 // pred_region
          _
        $region24: #{tpu_custom_call.1} parent=11 // pred_fallthru
          _
        // Predicated region
        $region25: #{tpu_custom_call.1} parent=11 // pred_check
          %p227 = pneg %p127
        $region26: #{tpu_custom_call.1} parent=11 // pred_check_branch
          %229 = sbr.rel (%p227) target = $region28
        $region27: #{tpu_custom_call.1} parent=11 // pred_region
          _
        $region28: #{tpu_custom_call.1} parent=11 // pred_fallthru
          _
        // Predicated region
        $region29: #{tpu_custom_call.1} parent=11 // pred_check
          %p230 = pneg %p148
        $region30: #{tpu_custom_call.1} parent=11 // pred_check_branch
          %232 = sbr.rel (%p230) target = $region32
        $region31: #{tpu_custom_call.1} parent=11 // pred_region
          _
        $region32: #{tpu_custom_call.1} parent=11 // pred_fallthru
          _
        // Predicated region
        $region33: #{tpu_custom_call.1} parent=11 // pred_check
          %p233 = pneg %p169
        $region34: #{tpu_custom_call.1} parent=11 // pred_check_branch
          %235 = sbr.rel (%p233) target = $region36
        $region35: #{tpu_custom_call.1} parent=11 // pred_region
          _
        $region36: #{tpu_custom_call.1} parent=11 // pred_fallthru
          _
      $region12: #{tpu_custom_call.1} parent=5 // pred_fallthru
        _
      %p236 = scmp.lt.s32.totalorder %s17, 2
      // Predicated region
      $region37: #{tpu_custom_call.1} parent=5 // pred_check
        %p237 = pneg %p236
      $region38: #{tpu_custom_call.1} parent=5 // pred_check_branch
        %239 = sbr.rel (%p237) target = $region40
      $region39: #{tpu_custom_call.1} parent=5 // pred_region
        // Predicated region
        $region41: #{tpu_custom_call.1} parent=39 // pred_check
          %p240 = pneg %p37
        $region42: #{tpu_custom_call.1} parent=39 // pred_check_branch
          %242 = sbr.rel (%p240) target = $region44
        $region43: #{tpu_custom_call.1} parent=39 // pred_region
          %s243 = smul.u32 2, %s17
          %p244 = scmp.lt.s32.totalorder %s243, 3
          %s245 = scalar_select %p244, %s243, 3
          %s246 = smul.addr %s245, 4
          %s247 = scalar_lea.vmem %s0, %s246
          %s248 = smul.u32 2, %s17
        $region44: #{tpu_custom_call.1} parent=39 // pred_fallthru
          _
      $region40: #{tpu_custom_call.1} parent=5 // pred_fallthru
        _
      %p249 = scmp.le.s32.totalorder 1, %s17
      %p250 = scmp.lt.s32.totalorder %s17, 3
      %p251 = pnand %p249, %p250
      %p252 = pneg %p251
      // Predicated region
      $region45: #{tpu_custom_call.1} parent=5 // pred_check
        _
      $region46: #{tpu_custom_call.1} parent=5 // pred_check_branch
        %254 = sbr.rel (%p251) target = $region48
      $region47: #{tpu_custom_call.1} parent=5 // pred_region
        %s255 = ssub.s32 %s17, 1
        // Predicated region
        $region49: #{tpu_custom_call.1} parent=47 // pred_check
          %p256 = pneg %p64
        $region50: #{tpu_custom_call.1} parent=47 // pred_check_branch
          %258 = sbr.rel (%p256) target = $region52
        $region51: #{tpu_custom_call.1} parent=47 // pred_region
          %259 = dma.done [#allocation3], 256
        $region52: #{tpu_custom_call.1} parent=47 // pred_fallthru
          _
        %s260 = smul.u32 2, %s22
        %p261 = scmp.lt.s32.totalorder %s260, 3
        %s262 = scalar_select %p261, %s260, 3
        %s263 = smul.addr %s262, 4
        %s264 = scalar_lea.vmem %s0, %s263
        %p265 = pneg %p43
        %p266 = pneg %p40
        %p267 = pneg %p64
        %p268 = pneg %p61
        %p269 = pneg %p85
        %p270 = pneg %p82
        %p271 = pneg %p106
        %p272 = pneg %p103
        %p273 = pneg %p127
        %p274 = pneg %p124
        %p275 = pneg %p148
        %p276 = pneg %p145
        %p277 = pneg %p169
        %p278 = pneg %p166
        %p279 = pneg %p195
        %p280 = pneg %p192
        %s281 = sand.u32 %s182, 1
        %s282 = scalar_lea.sflag [#allocation4], %s281
        %s283 = sand.u32 %s182, 1
        %s284 = smul.addr %s283, 16
        %s285 = scalar_lea.vmem [#allocation5], %s284
        %s286 = smul.u32 2, %s22
        %p287 = scmp.lt.s32.totalorder %s286, 3
        %s288 = scalar_select %p287, %s286, 3
        %s289 = smul.addr %s288, 4
        %s290 = scalar_lea.vmem %s0, %s289
        %s291 = smul.u32 2, %s22
        %s292 = smul.u32 2, %s22
        %v293 = vld [vmem:[%s290] sm:$0xff]
        %v294 = vld [vmem:[%s2] sm:$0xf]
        %v295 = vld [vmem:[%s2] sm:$0xff]
        %v296 = vld [vmem:[%s6] sm:$0xff]
        %v298 = vcombine.high %v293, %v293
        %vm299 = vcmask 31744
        %v301 = vsel %vm299, %v296, 0
        %vm303 = vcmask 1043456
        %v304 = vsel %vm303, %v293, 0
        %v306 = vsel %vm303, %v298, 0
        %308 = vmatprep.subr.mxu0 %v306
        %309 = vmatpush1.msra.mxu0 %v304
        %310 = vmatprep.subr.mxu0 0.0
        %311 = vmatpush1.msra.mxu0 0.0
        %312 = vmatprep.subr.mxu0 0.0
        %313 = vmatpush1.msra.mxu0 0.0
        %314 = vmatprep.subr.mxu0 0.0
        %315 = vmatpush1.msra.mxu0 0.0
        %316 = vmatprep.subr.mxu0 0.0
        %317 = vmatpush1.msra.mxu0 0.0
        %318 = vmatprep.subr.mxu0 0.0
        %319 = vmatpush1.msra.mxu0 0.0
        %320 = vmatprep.subr.mxu0 0.0
        %321 = vmatpush1.msra.mxu0 0.0
        %322 = vmatprep.subr.mxu0 0.0
        %323 = vmatpush1.msra.mxu0 0.0
        %324 = vmatprep.subr.mxu0 0.0
        %325 = vmatpush1.msra.mxu0 0.0
        %326 = vmatprep.subr.mxu0 0.0
        %327 = vmatpush1.msra.mxu0 0.0
        %328 = vmatprep.subr.mxu0 0.0
        %329 = vmatpush1.msra.mxu0 0.0
        %330 = vmatprep.subr.mxu0 0.0
        %331 = vmatpush1.msra.mxu0 0.0
        %332 = vmatprep.subr.mxu0 0.0
        %333 = vmatpush1.msra.mxu0 0.0
        %334 = vmatprep.subr.mxu0 0.0
        %335 = vmatpush1.msra.mxu0 0.0
        %336 = vmatprep.subr.mxu0 0.0
        %337 = vmatpush1.msra.mxu0 0.0
        %338 = vmatprep.subr.mxu0 0.0
        %339 = vmatpush1.msra.mxu0 0.0
        %340 = vmatprep.subr.mxu0 0.0
        %341 = vmatpush1.msra.mxu0 0.0
        %342 = vmatprep.subr.mxu0 0.0
        %343 = vmatpush1.msra.mxu0 0.0
        %344 = vmatprep.subr.mxu0 0.0
        %345 = vmatpush1.msra.mxu0 0.0
        %346 = vmatprep.subr.mxu0 0.0
        %347 = vmatpush1.msra.mxu0 0.0
        %348 = vmatprep.subr.mxu0 0.0
        %349 = vmatpush1.msra.mxu0 0.0
        %350 = vmatprep.subr.mxu0 0.0
        %351 = vmatpush1.msra.mxu0 0.0
        %352 = vmatprep.subr.mxu0 0.0
        %353 = vmatpush1.msra.mxu0 0.0
        %354 = vmatprep.subr.mxu0 0.0
        %355 = vmatpush1.msra.mxu0 0.0
        %356 = vmatprep.subr.mxu0 0.0
        %357 = vmatpush1.msra.mxu0 0.0
        %358 = vmatprep.subr.mxu0 0.0
        %359 = vmatpush1.msra.mxu0 0.0
        %360 = vmatprep.subr.mxu0 0.0
        %361 = vmatpush1.msra.mxu0 0.0
        %362 = vmatprep.subr.mxu0 0.0
        %363 = vmatpush1.msra.mxu0 0.0
        %364 = vmatprep.subr.mxu0 0.0
        %365 = vmatpush1.msra.mxu0 0.0
        %366 = vmatprep.subr.mxu0 0.0
        %367 = vmatpush1.msra.mxu0 0.0
        %368 = vmatprep.subr.mxu0 0.0
        %369 = vmatpush1.msra.mxu0 0.0
        %370 = vmatprep.subr.mxu0 0.0
        %371 = vmatpush1.msra.mxu0 0.0
        %372 = vmatprep.mubr.f32.mxu0 0.0
        %373 = vmatmul.mubr.f32.gmra.mrb[0].mxu0 %v301
        %v374 = vpop.f32.mrb[0].mxu0
        %v375 = vadd.f32 0.0, %v374
        %v376 = vpop.f32.mrb[0].mxu0
        %v377 = vadd.f32 0.0, %v376
        %378 = vdwg.mxu0
        %380 = vset.pattern.permute.xlu0 0
        %381 = vperm.xlu0 %380, %v294
        %v382 = vpop.permute.xlu0 %381
        %v384 = vunpack.c.l.s4 839922192
        %v385 = vunpack.c.0.s8 %v384
        %v386 = vlaneseq
        %v387 = vshrl.u32 %v386, 7
        %v388 = vsub.s32 %v385, %v387
        %v389 = vrot.slane %v382, %v388
        %v391 = vmul.f32 %v293, %v389
        %392 = vset.pattern.permute.xlu0 1
        %393 = vperm.xlu0 %392, %v294
        %v394 = vpop.permute.xlu0 %393
        %v396 = vunpack.c.l.s4 839922192
        %v397 = vunpack.c.0.s8 %v396
        %v398 = vlaneseq
        %v399 = vshrl.u32 %v398, 7
        %v400 = vsub.s32 %v397, %v399
        %v401 = vrot.slane %v394, %v400
        %v403 = vadd.f32 %v391, %v401
        %v404 = vmax.f32 %v403, 0.0
        %v405 = vld [vmem:[%s3] sm:$0xff]
        %407 = vset.pattern.permute.xlu0 2
        %408 = vperm.xlu0 %407, %v295
        %v409 = vpop.permute.xlu0 %408
        %v412 = vcombine.high %v404, %v404
        %v414 = vsel %vm299, %v405, 0
        %v416 = vsel %vm303, %v404, 0
        %v418 = vsel %vm303, %v412, 0
        %420 = vmatprep.subr.mxu0 %v418
        %421 = vmatpush1.msra.mxu0 %v416
        %422 = vmatprep.subr.mxu0 0.0
        %423 = vmatpush1.msra.mxu0 0.0
        %424 = vmatprep.subr.mxu0 0.0
        %425 = vmatpush1.msra.mxu0 0.0
        %426 = vmatprep.subr.mxu0 0.0
        %427 = vmatpush1.msra.mxu0 0.0
        %428 = vmatprep.subr.mxu0 0.0
        %429 = vmatpush1.msra.mxu0 0.0
        %430 = vmatprep.subr.mxu0 0.0
        %431 = vmatpush1.msra.mxu0 0.0
        %432 = vmatprep.subr.mxu0 0.0
        %433 = vmatpush1.msra.mxu0 0.0
        %434 = vmatprep.subr.mxu0 0.0
        %435 = vmatpush1.msra.mxu0 0.0
        %436 = vmatprep.subr.mxu0 0.0
        %437 = vmatpush1.msra.mxu0 0.0
        %438 = vmatprep.subr.mxu0 0.0
        %439 = vmatpush1.msra.mxu0 0.0
        %440 = vmatprep.subr.mxu0 0.0
        %441 = vmatpush1.msra.mxu0 0.0
        %442 = vmatprep.subr.mxu0 0.0
        %443 = vmatpush1.msra.mxu0 0.0
        %444 = vmatprep.subr.mxu0 0.0
        %445 = vmatpush1.msra.mxu0 0.0
        %446 = vmatprep.subr.mxu0 0.0
        %447 = vmatpush1.msra.mxu0 0.0
        %448 = vmatprep.subr.mxu0 0.0
        %449 = vmatpush1.msra.mxu0 0.0
        %450 = vmatprep.subr.mxu0 0.0
        %451 = vmatpush1.msra.mxu0 0.0
        %452 = vmatprep.subr.mxu0 0.0
        %453 = vmatpush1.msra.mxu0 0.0
        %454 = vmatprep.subr.mxu0 0.0
        %455 = vmatpush1.msra.mxu0 0.0
        %456 = vmatprep.subr.mxu0 0.0
        %457 = vmatpush1.msra.mxu0 0.0
        %458 = vmatprep.subr.mxu0 0.0
        %459 = vmatpush1.msra.mxu0 0.0
        %460 = vmatprep.subr.mxu0 0.0
        %461 = vmatpush1.msra.mxu0 0.0
        %462 = vmatprep.subr.mxu0 0.0
        %463 = vmatpush1.msra.mxu0 0.0
        %464 = vmatprep.subr.mxu0 0.0
        %465 = vmatpush1.msra.mxu0 0.0
        %466 = vmatprep.subr.mxu0 0.0
        %467 = vmatpush1.msra.mxu0 0.0
        %468 = vmatprep.subr.mxu0 0.0
        %469 = vmatpush1.msra.mxu0 0.0
        %470 = vmatprep.subr.mxu0 0.0
        %471 = vmatpush1.msra.mxu0 0.0
        %472 = vmatprep.subr.mxu0 0.0
        %473 = vmatpush1.msra.mxu0 0.0
        %474 = vmatprep.subr.mxu0 0.0
        %475 = vmatpush1.msra.mxu0 0.0
        %476 = vmatprep.subr.mxu0 0.0
        %477 = vmatpush1.msra.mxu0 0.0
        %478 = vmatprep.subr.mxu0 0.0
        %479 = vmatpush1.msra.mxu0 0.0
        %480 = vmatprep.subr.mxu0 0.0
        %481 = vmatpush1.msra.mxu0 0.0
        %482 = vmatprep.subr.mxu0 0.0
        %483 = vmatpush1.msra.mxu0 0.0
        %484 = vmatprep.mubr.f32.mxu0 0.0
        %485 = vmatmul.mubr.f32.gmra.mrb[0].mxu0 %v414
        %v486 = vpop.f32.mrb[0].mxu0
        %v487 = vadd.f32 %v409, %v486
        %v488 = vpop.f32.mrb[0].mxu0
        %v489 = vadd.f32 %v409, %v488
        %490 = vdwg.mxu0
        %v491 = vmax.f32 %v487, 0.0
        %v492 = vmax.f32 %v489, 0.0
        %493 = vrot.lane.b32.xlu0 %v491, 17
        %v494 = vpop.permute.xlu0 %493
        %495 = vrot.lane.b32.xlu0 %v492, 17
        %v496 = vpop.permute.xlu0 %495
        %v497 = vlaneseq
        %v498 = vand.u32 %v497, 127
        %vm499 = vcmp.lt.s32.totalorder %v498, 17
        %v500 = vsel %vm499, %v494, %v496
        %v501 = vsel %vm499, %v496, %v494
        %v502 = vld [vmem:[#allocation2] ss:$8 sm:$0x3]
        %v504 = vlaneseq
        %v505 = vshrl.u32 %v504, 7
        %v506 = vsub.s32 0, %v505
        %v507 = vrot.slane %v502, %v506
        %v508 = vlaneseq
        %v509 = vshrl.u32 %v508, 7
        %v510 = vsub.s32 1, %v509
        %v511 = vrot.slane %v502, %v510
        %v514 = vmul.f32 %v501, %v507
        %v515 = vmul.f32 %v500, %v511
        %516 = vrot.lane.b32.xlu0 %v491, 16
        %v517 = vpop.permute.xlu0 %516
        %518 = vrot.lane.b32.xlu0 %v492, 16
        %v519 = vpop.permute.xlu0 %518
        %vm520 = vcmp.lt.s32.totalorder %v498, 16
        %v521 = vsel %vm520, %v517, %v519
        %v522 = vsel %vm520, %v519, %v517
        %s523 = scalar_lea.vmem [#allocation2], 1
        %v524 = vld [vmem:[%s523] ss:$8 sm:$0x3]
        %v526 = vlaneseq
        %v527 = vshrl.u32 %v526, 7
        %v528 = vsub.s32 0, %v527
        %v529 = vrot.slane %v524, %v528
        %v530 = vlaneseq
        %v531 = vshrl.u32 %v530, 7
        %v532 = vsub.s32 1, %v531
        %v533 = vrot.slane %v524, %v532
        %v536 = vmul.f32 %v522, %v529
        %v537 = vmul.f32 %v521, %v533
        %538 = vrot.lane.b32.xlu0 %v491, 15
        %v539 = vpop.permute.xlu0 %538
        %540 = vrot.lane.b32.xlu0 %v492, 15
        %v541 = vpop.permute.xlu0 %540
        %vm542 = vcmp.lt.s32.totalorder %v498, 15
        %v543 = vsel %vm542, %v539, %v541
        %v544 = vsel %vm542, %v541, %v539
        %s545 = scalar_lea.vmem [#allocation2], 2
        %v546 = vld [vmem:[%s545] ss:$8 sm:$0x3]
        %v548 = vlaneseq
        %v549 = vshrl.u32 %v548, 7
        %v550 = vsub.s32 0, %v549
        %v551 = vrot.slane %v546, %v550
        %v552 = vlaneseq
        %v553 = vshrl.u32 %v552, 7
        %v554 = vsub.s32 1, %v553
        %v555 = vrot.slane %v546, %v554
        %v558 = vmul.f32 %v544, %v551
        %v559 = vmul.f32 %v543, %v555
        %560 = vrot.lane.b32.xlu0 %v491, 1
        %v561 = vpop.permute.xlu0 %560
        %562 = vrot.lane.b32.xlu0 %v492, 1
        %v563 = vpop.permute.xlu0 %562
        %vm564 = vcmp.lt.s32.totalorder %v498, 1
        %v565 = vsel %vm564, %v561, %v563
        %v566 = vsel %vm564, %v563, %v561
        %s567 = scalar_lea.vmem [#allocation2], 3
        %v568 = vld [vmem:[%s567] ss:$8 sm:$0x3]
        %v570 = vlaneseq
        %v571 = vshrl.u32 %v570, 7
        %v572 = vsub.s32 0, %v571
        %v573 = vrot.slane %v568, %v572
        %v574 = vlaneseq
        %v575 = vshrl.u32 %v574, 7
        %v576 = vsub.s32 1, %v575
        %v577 = vrot.slane %v568, %v576
        %v580 = vmul.f32 %v566, %v573
        %v581 = vmul.f32 %v565, %v577
        %582 = vrot.lane.b32.xlu0 %v491, 127
        %v583 = vpop.permute.xlu0 %582
        %584 = vrot.lane.b32.xlu0 %v492, 127
        %v585 = vpop.permute.xlu0 %584
        %vm586 = vcmp.lt.s32.totalorder %v498, 127
        %v587 = vsel %vm586, %v583, %v585
        %v588 = vsel %vm586, %v585, %v583
        %s589 = scalar_lea.vmem [#allocation2], 4
        %v590 = vld [vmem:[%s589] ss:$8 sm:$0x3]
        %v592 = vlaneseq
        %v593 = vshrl.u32 %v592, 7
        %v594 = vsub.s32 0, %v593
        %v595 = vrot.slane %v590, %v594
        %v596 = vlaneseq
        %v597 = vshrl.u32 %v596, 7
        %v598 = vsub.s32 1, %v597
        %v599 = vrot.slane %v590, %v598
        %v602 = vmul.f32 %v587, %v595
        %v603 = vmul.f32 %v588, %v599
        %604 = vrot.lane.b32.xlu0 %v491, 113
        %v605 = vpop.permute.xlu0 %604
        %606 = vrot.lane.b32.xlu0 %v492, 113
        %v607 = vpop.permute.xlu0 %606
        %vm608 = vcmp.lt.s32.totalorder %v498, 113
        %v609 = vsel %vm608, %v605, %v607
        %v610 = vsel %vm608, %v607, %v605
        %s611 = scalar_lea.vmem [#allocation2], 5
        %v612 = vld [vmem:[%s611] ss:$8 sm:$0x3]
        %v614 = vlaneseq
        %v615 = vshrl.u32 %v614, 7
        %v616 = vsub.s32 0, %v615
        %v617 = vrot.slane %v612, %v616
        %v618 = vlaneseq
        %v619 = vshrl.u32 %v618, 7
        %v620 = vsub.s32 1, %v619
        %v621 = vrot.slane %v612, %v620
        %v624 = vmul.f32 %v609, %v617
        %v625 = vmul.f32 %v610, %v621
        %626 = vrot.lane.b32.xlu0 %v491, 112
        %v627 = vpop.permute.xlu0 %626
        %628 = vrot.lane.b32.xlu0 %v492, 112
        %v629 = vpop.permute.xlu0 %628
        %vm630 = vcmp.lt.s32.totalorder %v498, 112
        %v631 = vsel %vm630, %v627, %v629
        %v632 = vsel %vm630, %v629, %v627
        %s633 = scalar_lea.vmem [#allocation2], 6
        %v634 = vld [vmem:[%s633] ss:$8 sm:$0x3]
        %v636 = vlaneseq
        %v637 = vshrl.u32 %v636, 7
        %v638 = vsub.s32 0, %v637
        %v639 = vrot.slane %v634, %v638
        %v640 = vlaneseq
        %v641 = vshrl.u32 %v640, 7
        %v642 = vsub.s32 1, %v641
        %v643 = vrot.slane %v634, %v642
        %v646 = vmul.f32 %v631, %v639
        %v647 = vmul.f32 %v632, %v643
        %648 = vrot.lane.b32.xlu0 %v491, 111
        %v649 = vpop.permute.xlu0 %648
        %650 = vrot.lane.b32.xlu0 %v492, 111
        %v651 = vpop.permute.xlu0 %650
        %vm652 = vcmp.lt.s32.totalorder %v498, 111
        %v653 = vsel %vm652, %v649, %v651
        %v654 = vsel %vm652, %v651, %v649
        %s655 = scalar_lea.vmem [#allocation2], 7
        %v656 = vld [vmem:[%s655] ss:$8 sm:$0x3]
        %v658 = vlaneseq
        %v659 = vshrl.u32 %v658, 7
        %v660 = vsub.s32 0, %v659
        %v661 = vrot.slane %v656, %v660
        %v662 = vlaneseq
        %v663 = vshrl.u32 %v662, 7
        %v664 = vsub.s32 1, %v663
        %v665 = vrot.slane %v656, %v664
        %v668 = vmul.f32 %v653, %v661
        %v669 = vmul.f32 %v654, %v665
        %v670 = vld [vmem:[%s4] sm:$0xff]
        %671 = vset.pattern.permute.xlu0 3
        %672 = vperm.xlu0 %671, %v295
        %v673 = vpop.permute.xlu0 %672
        %vm675 = vcmask 588800
        %v677 = vsel %vm675, %v670, 0
        %679 = vmatprep.subr.mxu0 %v515
        %680 = vmatpush1.msra.mxu0 %v514
        %681 = vmatprep.subr.mxu0 %v537
        %682 = vmatpush1.msra.mxu0 %v536
        %683 = vmatprep.subr.mxu0 %v559
        %684 = vmatpush1.msra.mxu0 %v558
        %685 = vmatprep.subr.mxu0 %v581
        %686 = vmatpush1.msra.mxu0 %v580
        %687 = vmatprep.subr.mxu0 %v492
        %688 = vmatpush1.msra.mxu0 %v491
        %689 = vmatprep.subr.mxu0 %v603
        %690 = vmatpush1.msra.mxu0 %v602
        %691 = vmatprep.subr.mxu0 %v625
        %692 = vmatpush1.msra.mxu0 %v624
        %693 = vmatprep.subr.mxu0 %v647
        %694 = vmatpush1.msra.mxu0 %v646
        %695 = vmatprep.subr.mxu0 %v669
        %696 = vmatpush1.msra.mxu0 %v668
        %697 = vmatprep.subr.mxu0 0.0
        %698 = vmatpush1.msra.mxu0 0.0
        %699 = vmatprep.subr.mxu0 0.0
        %700 = vmatpush1.msra.mxu0 0.0
        %701 = vmatprep.subr.mxu0 0.0
        %702 = vmatpush1.msra.mxu0 0.0
        %703 = vmatprep.subr.mxu0 0.0
        %704 = vmatpush1.msra.mxu0 0.0
        %705 = vmatprep.subr.mxu0 0.0
        %706 = vmatpush1.msra.mxu0 0.0
        %707 = vmatprep.subr.mxu0 0.0
        %708 = vmatpush1.msra.mxu0 0.0
        %709 = vmatprep.subr.mxu0 0.0
        %710 = vmatpush1.msra.mxu0 0.0
        %711 = vmatprep.subr.mxu0 0.0
        %712 = vmatpush1.msra.mxu0 0.0
        %713 = vmatprep.subr.mxu0 0.0
        %714 = vmatpush1.msra.mxu0 0.0
        %715 = vmatprep.subr.mxu0 0.0
        %716 = vmatpush1.msra.mxu0 0.0
        %717 = vmatprep.subr.mxu0 0.0
        %718 = vmatpush1.msra.mxu0 0.0
        %719 = vmatprep.subr.mxu0 0.0
        %720 = vmatpush1.msra.mxu0 0.0
        %721 = vmatprep.subr.mxu0 0.0
        %722 = vmatpush1.msra.mxu0 0.0
        %723 = vmatprep.subr.mxu0 0.0
        %724 = vmatpush1.msra.mxu0 0.0
        %725 = vmatprep.subr.mxu0 0.0
        %726 = vmatpush1.msra.mxu0 0.0
        %727 = vmatprep.subr.mxu0 0.0
        %728 = vmatpush1.msra.mxu0 0.0
        %729 = vmatprep.subr.mxu0 0.0
        %730 = vmatpush1.msra.mxu0 0.0
        %731 = vmatprep.subr.mxu0 0.0
        %732 = vmatpush1.msra.mxu0 0.0
        %733 = vmatprep.subr.mxu0 0.0
        %734 = vmatpush1.msra.mxu0 0.0
        %735 = vmatprep.subr.mxu0 0.0
        %736 = vmatpush1.msra.mxu0 0.0
        %737 = vmatprep.subr.mxu0 0.0
        %738 = vmatpush1.msra.mxu0 0.0
        %739 = vmatprep.subr.mxu0 0.0
        %740 = vmatpush1.msra.mxu0 0.0
        %741 = vmatprep.subr.mxu0 0.0
        %742 = vmatpush1.msra.mxu0 0.0
        %743 = vmatprep.mubr.f32.mxu0 0.0
        %744 = vmatmul.mubr.f32.gmra.mrb[0].mxu0 %v677
        %v745 = vpop.f32.mrb[0].mxu0
        %v746 = vadd.f32 %v673, %v745
        %v747 = vpop.f32.mrb[0].mxu0
        %v748 = vadd.f32 %v673, %v747
        %749 = vdwg.mxu0
        %v750 = vmax.f32 %v746, 0.0
        %v751 = vmax.f32 %v748, 0.0
        %v752 = vld [vmem:[%s5] sm:$0xff]
        %753 = vset.pattern.permute.xlu0 4
        %754 = vperm.xlu0 %753, %v295
        %v755 = vpop.permute.xlu0 %754
        %vm757 = vcmask 64512
        %v759 = vsel %vm757, %v752, 0
        %761 = vmatprep.subr.mxu0 %v751
        %762 = vmatpush1.msra.mxu0 %v750
        %763 = vmatprep.subr.mxu0 0.0
        %764 = vmatpush1.msra.mxu0 0.0
        %765 = vmatprep.subr.mxu0 0.0
        %766 = vmatpush1.msra.mxu0 0.0
        %767 = vmatprep.subr.mxu0 0.0
        %768 = vmatpush1.msra.mxu0 0.0
        %769 = vmatprep.subr.mxu0 0.0
        %770 = vmatpush1.msra.mxu0 0.0
        %771 = vmatprep.subr.mxu0 0.0
        %772 = vmatpush1.msra.mxu0 0.0
        %773 = vmatprep.subr.mxu0 0.0
        %774 = vmatpush1.msra.mxu0 0.0
        %775 = vmatprep.subr.mxu0 0.0
        %776 = vmatpush1.msra.mxu0 0.0
        %777 = vmatprep.subr.mxu0 0.0
        %778 = vmatpush1.msra.mxu0 0.0
        %779 = vmatprep.subr.mxu0 0.0
        %780 = vmatpush1.msra.mxu0 0.0
        %781 = vmatprep.subr.mxu0 0.0
        %782 = vmatpush1.msra.mxu0 0.0
        %783 = vmatprep.subr.mxu0 0.0
        %784 = vmatpush1.msra.mxu0 0.0
        %785 = vmatprep.subr.mxu0 0.0
        %786 = vmatpush1.msra.mxu0 0.0
        %787 = vmatprep.subr.mxu0 0.0
        %788 = vmatpush1.msra.mxu0 0.0
        %789 = vmatprep.subr.mxu0 0.0
        %790 = vmatpush1.msra.mxu0 0.0
        %791 = vmatprep.subr.mxu0 0.0
        %792 = vmatpush1.msra.mxu0 0.0
        %793 = vmatprep.subr.mxu0 0.0
        %794 = vmatpush1.msra.mxu0 0.0
        %795 = vmatprep.subr.mxu0 0.0
        %796 = vmatpush1.msra.mxu0 0.0
        %797 = vmatprep.subr.mxu0 0.0
        %798 = vmatpush1.msra.mxu0 0.0
        %799 = vmatprep.subr.mxu0 0.0
        %800 = vmatpush1.msra.mxu0 0.0
        %801 = vmatprep.subr.mxu0 0.0
        %802 = vmatpush1.msra.mxu0 0.0
        %803 = vmatprep.subr.mxu0 0.0
        %804 = vmatpush1.msra.mxu0 0.0
        %805 = vmatprep.subr.mxu0 0.0
        %806 = vmatpush1.msra.mxu0 0.0
        %807 = vmatprep.subr.mxu0 0.0
        %808 = vmatpush1.msra.mxu0 0.0
        %809 = vmatprep.subr.mxu0 0.0
        %810 = vmatpush1.msra.mxu0 0.0
        %811 = vmatprep.subr.mxu0 0.0
        %812 = vmatpush1.msra.mxu0 0.0
        %813 = vmatprep.subr.mxu0 0.0
        %814 = vmatpush1.msra.mxu0 0.0
        %815 = vmatprep.subr.mxu0 0.0
        %816 = vmatpush1.msra.mxu0 0.0
        %817 = vmatprep.subr.mxu0 0.0
        %818 = vmatpush1.msra.mxu0 0.0
        %819 = vmatprep.subr.mxu0 0.0
        %820 = vmatpush1.msra.mxu0 0.0
        %821 = vmatprep.subr.mxu0 0.0
        %822 = vmatpush1.msra.mxu0 0.0
        %823 = vmatprep.subr.mxu0 0.0
        %824 = vmatpush1.msra.mxu0 0.0
        %825 = vmatprep.mubr.f32.mxu0 0.0
        %826 = vmatmul.mubr.f32.gmra.mrb[0].mxu0 %v759
        %v827 = vpop.f32.mrb[0].mxu0
        %v828 = vadd.f32 %v755, %v827
        %v829 = vpop.f32.mrb[0].mxu0
        %v830 = vadd.f32 %v755, %v829
        %831 = vdwg.mxu0
        %v832 = vadd.f32 %v828, %v375
        %v833 = vadd.f32 %v830, %v377
        %834 = vst [vmem:[%s285] sm:$0xff] %v832
        %835 = vst [vmem:[%s285 + $0x8] sm:$0xff] %v833
        %s836 = sand.u32 %s182, 1
        %s837 = scalar_lea.sflag [#allocation4], %s836
        %s838 = sand.u32 %s182, 1
        %s839 = smul.addr %s838, 16
        %s840 = scalar_lea.vmem [#allocation5], %s839
        // Predicated region
        $region53: #{tpu_custom_call.1} parent=47 // pred_check
          %p841 = pneg %p192
        $region54: #{tpu_custom_call.1} parent=47 // pred_check_branch
          %843 = sbr.rel (%p841) target = $region56
        $region55: #{tpu_custom_call.1} parent=47 // pred_region
          %s844 = smul.u32 2, %s22
          %s846 = ssub.s32 256, 256
          %847 = vsyncadd %s837, %s846
          %s848 = smul.addr %s844, 128
          %s849 = scalar_lea.hbm %s7, %s848
          %s851 = sshll.u32 %s840, 4
          %s852 = int_to_ptr.vmem [resolvable:$true] %s851
          %854 = dma.vmem_to_hbm [thread:$0]  %s852, 256, %s849, %s837
        $region56: #{tpu_custom_call.1} parent=47 // pred_fallthru
          _
      $region48: #{tpu_custom_call.1} parent=5 // pred_fallthru
        _
      %p855 = scmp.le.s32.totalorder 2, %s17
      // Predicated region
      $region57: #{tpu_custom_call.1} parent=5 // pred_check
        %p856 = pneg %p855
      $region58: #{tpu_custom_call.1} parent=5 // pred_check_branch
        %858 = sbr.rel (%p856) target = $region60
      $region59: #{tpu_custom_call.1} parent=5 // pred_region
        %s859 = ssub.s32 %s17, 2
        // Predicated region
        $region61: #{tpu_custom_call.1} parent=59 // pred_check
          %p860 = pneg %p198
        $region62: #{tpu_custom_call.1} parent=59 // pred_check_branch
          %862 = sbr.rel (%p860) target = $region64
        $region63: #{tpu_custom_call.1} parent=59 // pred_region
          %s863 = sand.u32 %s183, 1
          %s864 = scalar_lea.sflag [#allocation4], %s863
          %s865 = sand.u32 %s183, 1
          %s866 = smul.addr %s865, 16
          %s867 = scalar_lea.vmem [#allocation5], %s866
          %868 = dma.done %s864, 256
        $region64: #{tpu_custom_call.1} parent=59 // pred_fallthru
          _
      $region60: #{tpu_custom_call.1} parent=5 // pred_fallthru
        _
    $region6: #{tpu_custom_call.1} parent=1 // loop_footer
      %s21 = sadd.s32 1, %s17
    $region7: #{tpu_custom_call.1} parent=1 // loop_footer_branch
      %16 = sbr.rel target = $region3
    $region8: #{tpu_custom_call.1} parent=1 // loop_exit
      _
    %869 = vsyncpa [#allocation3], 1
    %s870 = scalar_lea.sflag [#allocation3], 1
    %871 = vsyncpa %s870, 1
    %872 = vsyncpa [#allocation4], 1
    %s873 = scalar_lea.sflag [#allocation4], 1
    %874 = vsyncpa %s873, 1

</llo_original>
